<compile_context>
chip_gen: v6e
topology: v6e:2x2x1
jax: 0.10.0
libtpu: 0.0.40
codegen_flags: <defaults>
</compile_context>

<pallas_src>
import functools

import jax
import jax.numpy as jnp
from jax.experimental import pallas as pl
from jax.experimental.pallas import tpu as pltpu


def patch_embed_kernel(p_ref, w_ref, b_ref, o_ref):
    # p_ref: (1, N, K) bf16   w_ref: (K, E) bf16   b_ref: (1, E) f32   o_ref: (1, N, E) f32
    patches = p_ref[0]                                              # (N, K)
    acc = jnp.dot(patches, w_ref[...],
                  preferred_element_type=jnp.float32)               # (N, E) f32 accumulate
    o_ref[0] = acc + b_ref[...]                                     # bias broadcast in f32


def patch_embed(x, weight, bias, *, patch_size):
    """x: (B, C, H, W) f32; weight: (E, C, P, P) f32; bias: (E,) f32 -> (B, N, E) f32."""
    B, C, H, W = x.shape
    P = patch_size
    Gh, Gw = H // P, W // P
    N = Gh * Gw
    E = weight.shape[0]
    K = C * P * P

    # im2col in the wrapper (layout plumbing only, no compute).  Flatten order (c, ph, pw)
    # matches Conv2d's weight.reshape(E, C*P*P).
    patches = (x.reshape(B, C, Gh, P, Gw, P)
                 .transpose(0, 2, 4, 1, 3, 5)
                 .reshape(B, N, K)
                 .astype(jnp.bfloat16))
    w = weight.reshape(E, K).T.astype(jnp.bfloat16)                 # (K, E)
    b = bias.reshape(1, E).astype(jnp.float32)

    return pl.pallas_call(
        patch_embed_kernel,
        out_shape=jax.ShapeDtypeStruct((B, N, E), jnp.float32),
        grid_spec=pltpu.PrefetchScalarGridSpec(
            num_scalar_prefetch=0,
            grid=(B,),
            in_specs=[
                pl.BlockSpec((1, N, K), lambda bi: (bi, 0, 0)),     # per-batch patch matrix
                pl.BlockSpec((K, E), lambda bi: (0, 0)),            # full weight, resident
                pl.BlockSpec((1, E), lambda bi: (0, 0)),            # bias, resident
            ],
            out_specs=pl.BlockSpec((1, N, E), lambda bi: (bi, 0, 0)),
        ),
        compiler_params=pltpu.CompilerParams(
            dimension_semantics=("parallel",)),                     # batch across TCs (v7x)
    )(patches, w, b)


if __name__ == "__main__":
    # Small shapes consistent with the module (patch_size=16, in_channels=3), with
    # img_size / embed_dim scaled down but kept (8,128)-friendly: 16 patches, E=256, K=768.
    B, C, IMG, P, E = 2, 3, 64, 16, 256

    key = jax.random.PRNGKey(0)
    kx, kw, kb = jax.random.split(key, 3)
    x = jax.random.normal(kx, (B, C, IMG, IMG), dtype=jnp.float32)
    weight = (0.02 * jax.random.normal(kw, (E, C, P, P))).astype(jnp.float32)
    bias = (0.02 * jax.random.normal(kb, (E,))).astype(jnp.float32)

    y = patch_embed(x, weight, bias, patch_size=P)
    y = jax.block_until_ready(y)

    N = (IMG // P) ** 2
    assert y.shape == (B, N, E)
    assert bool(jnp.all(jnp.isfinite(y)))

    # Reference: Conv2d(stride=patch) -> Flatten(start_dim=2) -> transpose(1, 2).
    ref = jax.lax.conv_general_dilated(
        x, weight, window_strides=(P, P), padding="VALID",
        dimension_numbers=("NCHW", "OIHW", "NCHW"))
    ref = ref.reshape(B, E, N).transpose(0, 2, 1) + bias.reshape(1, 1, E)
    max_err = float(jnp.max(jnp.abs(y - ref)))
    assert max_err < 5e-2, f"max abs err {max_err}"

    print("KERNEL_OK")
</pallas_src>

<mosaic_0001>
module attributes {stable_mosaic.version = 11 : i64} {
  func.func @patch_embed_kernel(%arg0: i32, %arg1: memref<1x16x768xbf16, #tpu.memory_space<vmem>>, %arg2: memref<768x256xbf16, #tpu.memory_space<vmem>>, %arg3: memref<1x256xf32, #tpu.memory_space<vmem>>, %arg4: memref<1x16x256xf32, #tpu.memory_space<vmem>>) attributes {dimension_semantics = [#tpu.dimension_semantics<parallel>], iteration_bounds = array<i64: 2>, scalar_prefetch = 0 : i64, scratch_operands = 0 : i64, tpu.core_type = #tpu.core_type<tc>, window_params = [{transform_indices = @transform_0, window_bounds = array<i64: 1, 16, 768>}, {pipeline_mode = #tpu.pipeline_mode<synchronous>, transform_indices = @transform_1, window_bounds = array<i64: 768, 256>}, {pipeline_mode = #tpu.pipeline_mode<synchronous>, transform_indices = @transform_2, window_bounds = array<i64: 1, 256>}, {transform_indices = @transform_3, window_bounds = array<i64: 1, 16, 256>}]} {
    %c0 = arith.constant 0 : index
    %c0_0 = arith.constant 0 : index
    %c0_1 = arith.constant 0 : index
    %0 = vector.load %arg1[%c0, %c0_0, %c0_1] : memref<1x16x768xbf16, #tpu.memory_space<vmem>>, vector<1x16x768xbf16>
    %1 = vector.shape_cast %0 : vector<1x16x768xbf16> to vector<16x768xbf16>
    %c0_2 = arith.constant 0 : index
    %c0_3 = arith.constant 0 : index
    %2 = vector.load %arg2[%c0_2, %c0_3] : memref<768x256xbf16, #tpu.memory_space<vmem>>, vector<768x256xbf16>
    %cst = arith.constant dense<0.000000e+00> : vector<16x256xf32>
    %3 = tpu.matmul %1, %2, %cst {dimension_numbers = #tpu.dot_dimension_numbers<[1], [0], [0], [1], [0, 0, 1, 1], [], []>} : vector<16x768xbf16>, vector<768x256xbf16>, vector<16x256xf32> -> vector<16x256xf32>
    %c0_4 = arith.constant 0 : index
    %c0_5 = arith.constant 0 : index
    %4 = vector.load %arg3[%c0_4, %c0_5] : memref<1x256xf32, #tpu.memory_space<vmem>>, vector<1x256xf32>
    %5 = vector.broadcast %4 : vector<1x256xf32> to vector<16x256xf32>
    %6 = arith.addf %3, %5 : vector<16x256xf32>
    %c0_6 = arith.constant 0 : index
    %c0_7 = arith.constant 0 : index
    %c0_8 = arith.constant 0 : index
    %7 = vector.load %arg4[%c0_6, %c0_7, %c0_8] : memref<1x16x256xf32, #tpu.memory_space<vmem>>, vector<1x16x256xf32>
    %8 = vector.shape_cast %7 : vector<1x16x256xf32> to vector<16x256xf32>
    %9 = vector.shape_cast %6 : vector<16x256xf32> to vector<1x16x256xf32>
    tpu.vector_store %arg4[%c0_6, %c0_7, %c0_8], %9 {strides = array<i32>} : memref<1x16x256xf32, #tpu.memory_space<vmem>>, vector<1x16x256xf32>,
    return
  }
  func.func @transform_0(%arg0: i32) -> (i32, i32, i32) {
    %c0_i32 = arith.constant 0 : i32
    %c0_i32_0 = arith.constant 0 : i32
    %c0_i32_1 = arith.constant 0 : i32
    return %arg0, %c0_i32, %c0_i32_0 : i32, i32, i32
  }
  func.func @transform_1(%arg0: i32) -> (i32, i32) {
    %c0_i32 = arith.constant 0 : i32
    %c0_i32_0 = arith.constant 0 : i32
    %c0_i32_1 = arith.constant 0 : i32
    return %c0_i32, %c0_i32_0 : i32, i32
  }
  func.func @transform_2(%arg0: i32) -> (i32, i32) {
    %c0_i32 = arith.constant 0 : i32
    %c0_i32_0 = arith.constant 0 : i32
    %c0_i32_1 = arith.constant 0 : i32
    return %c0_i32, %c0_i32_0 : i32, i32
  }
  func.func @transform_3(%arg0: i32) -> (i32, i32, i32) {
    %c0_i32 = arith.constant 0 : i32
    %c0_i32_0 = arith.constant 0 : i32
    %c0_i32_1 = arith.constant 0 : i32
    return %arg0, %c0_i32, %c0_i32_0 : i32, i32, i32
  }
}

</mosaic_0001>

<llo_original>
// kernel: tpu_custom_call.1
$region0: #{tpu_custom_call.1}
  #allocation0 [shape = 'u32[]', space=smem, size = 0x4, offset = 0x4, fixed_abs, tag = 'smem constant byte address 0x4 - core index']
  #allocation1 [shape = 'u32[144,128]{1,0:T(1,128)}', space=vmem, size = 0x12000, scoped, tag = 'internal scratch']
  %s0 = inlined_call_operand.hbm [shape: bf16[2,16,768], index: 0, kind: input, shape index: {}]
  %s1 = inlined_call_operand.hbm [shape: bf16[768,256], index: 1, kind: input, shape index: {}]
  %s2 = inlined_call_operand.vmem [shape: f32[1,256], index: 2, kind: input, shape index: {}]
  %s3 = inlined_call_operand.hbm [shape: f32[2,16,256], index: 3, kind: output, shape index: {}]
  %s4 = sld [smem:[#allocation0]]
  $region53: #{tpu_custom_call.1} parent=0
    _
  %s6 = ssub.s32 1, %s4
  %s7 = scalar_select 0, %s6, %s4
  $region1: #{tpu_custom_call.1} parent=0
    #allocation2 [shape = 'u8[49152]{0}', space=vmem, size = 0xc000, scoped, tag = 'input window, operand 0']
    #allocation3 [shape = 's32[2]{0}', space=sflag, size = 0x8, scoped, tag = 'scoped memory for tpu_custom_call.1']
    #allocation4 [shape = 's32[2]{0}', space=sflag, size = 0x8, scoped, tag = 'scoped memory for tpu_custom_call.1']
    #allocation5 [shape = 'u8[393216]{0}', space=vmem, size = 0x60000, scoped, tag = 'input window, operand 1, single buffered']
    #allocation6 [shape = 's32[1]{0}', space=sflag, size = 0x4, scoped, tag = 'scoped memory for tpu_custom_call.1']
    #allocation7 [shape = 'u8[32768]{0}', space=vmem, size = 0x8000, scoped, tag = 'output window, operand 0']
    %8 = vsyncpa [#allocation3], 0
    %s9 = scalar_lea.sflag [#allocation3], 1
    %10 = vsyncpa %s9, 0
    %11 = vsyncpa [#allocation6], 0
    %12 = vsyncpa [#allocation4], 0
    %s13 = scalar_lea.sflag [#allocation4], 1
    %14 = vsyncpa %s13, 0
    loop: start=0, step=1, limit=4
    $region2: #{tpu_custom_call.1} parent=1 // loop_pre_header
      _
    $region3: #{tpu_custom_call.1} parent=1 // loop_header
      %s16 = sphi 0, %s20
      %p17 = scmp.ge.s32.totalorder %s16, 4
      %s26 = sphi 0, %s28
      %s29 = sphi 0, %s26
      %s30 = sphi 0, %s29
      %s46 = sphi 0, %s30
      %s50 = sphi 0, %s50
      %s52 = sphi 0, %s50
      %s53 = sphi 0, %s52
      %s67 = sphi 0, %s53
      %s71 = sphi 0, %s71
      %s73 = sphi 0, %s71
      %s74 = sphi 0, %s73
      %s88 = sphi 0, %s74
      %s94 = sphi 0, %s96
      %s97 = sphi 0, %s94
      %s98 = sphi 0, %s97
      %s114 = sphi 0, %s98
    $region4: #{tpu_custom_call.1} parent=1 // loop_header_branch
      %19 = sbr.rel (%p17) target = $region8
    $region5: #{tpu_custom_call.1} parent=1 // loop_body
      %s21 = ssub.s32 %s16, 1
      %s22 = ssub.s32 %s16, 2
      %s23 = sadd.s32 %s16, 1
      %s24 = ssub.s32 %s16, %s23
      %p25 = scmp.eq.s32.totalorder %s24, 0
      %s27 = sadd.s32 %s26, 1
      %s28 = scalar_select %p25, %s26, %s27
      %p31 = pneg %p25
      %p32 = scmp.eq.s32.totalorder %s16, 1
      %p33 = por %p31, %p32
      %p34 = scmp.ne.s32.totalorder %s26, %s29
      %p35 = scmp.eq.s32.totalorder %s16, 0
      %p36 = por %p34, %p35
      %p37 = scmp.ne.s32.totalorder %s26, %s29
      %p38 = scmp.eq.s32.totalorder %s21, 1
      %p39 = por %p37, %p38
      %p40 = scmp.ne.s32.totalorder %s29, %s30
      %p41 = scmp.eq.s32.totalorder %s21, 0
      %p42 = por %p40, %p41
      %p43 = scmp.ne.s32.totalorder %s29, %s30
      %p44 = scmp.eq.s32.totalorder %s22, 1
      %p45 = por %p43, %p44
      %p47 = scmp.ne.s32.totalorder %s30, %s46
      %p48 = scmp.eq.s32.totalorder %s22, 0
      %p49 = por %p47, %p48
      %s51 = sadd.s32 %s50, 1
      %p54 = scmp.eq.s32.totalorder %s16, 1
      %p55 = scmp.ne.s32.totalorder %s50, %s52
      %p56 = scmp.eq.s32.totalorder %s16, 0
      %p57 = por %p55, %p56
      %p58 = scmp.ne.s32.totalorder %s50, %s52
      %p59 = scmp.eq.s32.totalorder %s21, 1
      %p60 = por %p58, %p59
      %p61 = scmp.ne.s32.totalorder %s52, %s53
      %p62 = scmp.eq.s32.totalorder %s21, 0
      %p63 = por %p61, %p62
      %p64 = scmp.ne.s32.totalorder %s52, %s53
      %p65 = scmp.eq.s32.totalorder %s22, 1
      %p66 = por %p64, %p65
      %p68 = scmp.ne.s32.totalorder %s53, %s67
      %p69 = scmp.eq.s32.totalorder %s22, 0
      %p70 = por %p68, %p69
      %s72 = sadd.s32 %s71, 1
      %p75 = scmp.eq.s32.totalorder %s16, 1
      %p76 = scmp.ne.s32.totalorder %s71, %s73
      %p77 = scmp.eq.s32.totalorder %s16, 0
      %p78 = por %p76, %p77
      %p79 = scmp.ne.s32.totalorder %s71, %s73
      %p80 = scmp.eq.s32.totalorder %s21, 1
      %p81 = por %p79, %p80
      %p82 = scmp.ne.s32.totalorder %s73, %s74
      %p83 = scmp.eq.s32.totalorder %s21, 0
      %p84 = por %p82, %p83
      %p85 = scmp.ne.s32.totalorder %s73, %s74
      %p86 = scmp.eq.s32.totalorder %s22, 1
      %p87 = por %p85, %p86
      %p89 = scmp.ne.s32.totalorder %s74, %s88
      %p90 = scmp.eq.s32.totalorder %s22, 0
      %p91 = por %p89, %p90
      %s92 = ssub.s32 %s16, %s23
      %p93 = scmp.eq.s32.totalorder %s92, 0
      %s95 = sadd.s32 %s94, 1
      %s96 = scalar_select %p93, %s94, %s95
      %p99 = pneg %p93
      %p100 = scmp.eq.s32.totalorder %s16, 1
      %p101 = por %p99, %p100
      %p102 = scmp.ne.s32.totalorder %s94, %s97
      %p103 = scmp.eq.s32.totalorder %s16, 0
      %p104 = por %p102, %p103
      %p105 = scmp.ne.s32.totalorder %s94, %s97
      %p106 = scmp.eq.s32.totalorder %s21, 1
      %p107 = por %p105, %p106
      %p108 = scmp.ne.s32.totalorder %s97, %s98
      %p109 = scmp.eq.s32.totalorder %s21, 0
      %p110 = por %p108, %p109
      %p111 = scmp.ne.s32.totalorder %s97, %s98
      %p112 = scmp.eq.s32.totalorder %s22, 1
      %p113 = por %p111, %p112
      %p115 = scmp.ne.s32.totalorder %s98, %s114
      %p116 = scmp.eq.s32.totalorder %s22, 0
      %p117 = por %p115, %p116
      %p118 = scmp.le.s32.totalorder 1, %s16
      %p119 = scmp.lt.s32.totalorder %s16, 3
      %p120 = pnand %p118, %p119
      %p121 = pneg %p120
      // Predicated region
      $region9: #{tpu_custom_call.1} parent=5 // pred_check
        _
      $region10: #{tpu_custom_call.1} parent=5 // pred_check_branch
        %123 = sbr.rel (%p120) target = $region12
      $region11: #{tpu_custom_call.1} parent=5 // pred_region
        %s124 = ssub.s32 %s16, 1
        // Predicated region
        $region13: #{tpu_custom_call.1} parent=11 // pred_check
          %p125 = pneg %p63
        $region14: #{tpu_custom_call.1} parent=11 // pred_check_branch
          %127 = sbr.rel (%p125) target = $region16
        $region15: #{tpu_custom_call.1} parent=11 // pred_region
          %s129 = ssub.s32 12288, 12288
          %130 = vsyncadd [#allocation6], %s129
          %s131 = sshll.u32 [#allocation5], 4
          %s132 = int_to_ptr.vmem [resolvable:$true] %s131
          %137 = dma.hbm_to_vmem [thread:$0]  %s1, 12288, %s132, [#allocation6], 128, 128, 8
        $region16: #{tpu_custom_call.1} parent=11 // pred_fallthru
          _
        // Predicated region
        $region17: #{tpu_custom_call.1} parent=11 // pred_check
          %p138 = pneg %p84
        $region18: #{tpu_custom_call.1} parent=11 // pred_check_branch
          %140 = sbr.rel (%p138) target = $region20
        $region19: #{tpu_custom_call.1} parent=11 // pred_region
          _
        $region20: #{tpu_custom_call.1} parent=11 // pred_fallthru
          _
      $region12: #{tpu_custom_call.1} parent=5 // pred_fallthru
        _
      %p141 = scmp.lt.s32.totalorder %s16, 2
      // Predicated region
      $region21: #{tpu_custom_call.1} parent=5 // pred_check
        %p142 = pneg %p141
      $region22: #{tpu_custom_call.1} parent=5 // pred_check_branch
        %144 = sbr.rel (%p142) target = $region24
      $region23: #{tpu_custom_call.1} parent=5 // pred_region
        // Predicated region
        $region25: #{tpu_custom_call.1} parent=23 // pred_check
          %p145 = pneg %p36
        $region26: #{tpu_custom_call.1} parent=23 // pred_check_branch
          %147 = sbr.rel (%p145) target = $region28
        $region27: #{tpu_custom_call.1} parent=23 // pred_region
          %s148 = sand.u32 %s26, 1
          %s149 = scalar_lea.sflag [#allocation3], %s148
          %s150 = sand.u32 %s26, 1
          %s151 = smul.addr %s150, 48
          %s152 = scalar_lea.vmem [#allocation2], %s151
          %s154 = ssub.s32 768, 768
          %155 = vsyncadd %s149, %s154
          %s156 = smul.addr %s16, 12
          %s157 = smul.addr %s156, 64
          %s158 = scalar_lea.hbm %s0, %s157
          %s159 = sshll.u32 %s152, 4
          %s160 = int_to_ptr.vmem [resolvable:$true] %s159
          %165 = dma.hbm_to_vmem [thread:$0]  %s158, 768, %s160, %s149, 384, 384, 24
        $region28: #{tpu_custom_call.1} parent=23 // pred_fallthru
          _
      $region24: #{tpu_custom_call.1} parent=5 // pred_fallthru
        _
      %p166 = scmp.le.s32.totalorder 1, %s16
      %p167 = scmp.lt.s32.totalorder %s16, 3
      %p168 = pnand %p166, %p167
      %p169 = pneg %p168
      // Predicated region
      $region29: #{tpu_custom_call.1} parent=5 // pred_check
        _
      $region30: #{tpu_custom_call.1} parent=5 // pred_check_branch
        %171 = sbr.rel (%p168) target = $region32
      $region31: #{tpu_custom_call.1} parent=5 // pred_region
        %s172 = ssub.s32 %s16, 1
        %s173 = sand.u32 %s29, 1
        %s174 = scalar_lea.sflag [#allocation3], %s173
        %s175 = sand.u32 %s29, 1
        %s176 = smul.addr %s175, 48
        %s177 = scalar_lea.vmem [#allocation2], %s176
        // Predicated region
        $region33: #{tpu_custom_call.1} parent=31 // pred_check
          %p178 = pneg %p42
        $region34: #{tpu_custom_call.1} parent=31 // pred_check_branch
          %180 = sbr.rel (%p178) target = $region36
        $region35: #{tpu_custom_call.1} parent=31 // pred_region
          %181 = dma.done %s174, 768
        $region36: #{tpu_custom_call.1} parent=31 // pred_fallthru
          _
        // Predicated region
        $region37: #{tpu_custom_call.1} parent=31 // pred_check
          %p182 = pneg %p63
        $region38: #{tpu_custom_call.1} parent=31 // pred_check_branch
          %184 = sbr.rel (%p182) target = $region40
        $region39: #{tpu_custom_call.1} parent=31 // pred_region
          %185 = dma.done [#allocation6], 12288
        $region40: #{tpu_custom_call.1} parent=31 // pred_fallthru
          _
        %s186 = sand.u32 %s29, 1
        %s187 = scalar_lea.sflag [#allocation3], %s186
        %s188 = sand.u32 %s29, 1
        %s189 = smul.addr %s188, 48
        %s190 = scalar_lea.vmem [#allocation2], %s189
        %p191 = pneg %p42
        %p192 = pneg %p39
        %p193 = pneg %p63
        %p194 = pneg %p60
        %p195 = pneg %p84
        %p196 = pneg %p81
        %p197 = pneg %p110
        %p198 = pneg %p107
        %s199 = sand.u32 %s97, 1
        %s200 = scalar_lea.sflag [#allocation4], %s199
        %s201 = sand.u32 %s97, 1
        %s202 = smul.addr %s201, 32
        %s203 = scalar_lea.vmem [#allocation7], %s202
        %v204 = vld [vmem:[%s177] sm:$0xff]
        %v205 = vld [vmem:[%s177 + $0x8] sm:$0xff]
        %v206 = vld [vmem:[%s177 + $0x10] sm:$0xff]
        %v207 = vld [vmem:[%s177 + $0x18] sm:$0xff]
        %v208 = vld [vmem:[%s177 + $0x20] sm:$0xff]
        %v209 = vld [vmem:[%s177 + $0x28] sm:$0xff]
        %v210 = vld [vmem:[#allocation5] sm:$0xff]
        %v211 = vld [vmem:[#allocation5 + $0x8] sm:$0xff]
        %v212 = vld [vmem:[#allocation5 + $0x10] sm:$0xff]
        %v213 = vld [vmem:[#allocation5 + $0x18] sm:$0xff]
        %v214 = vld [vmem:[#allocation5 + $0x20] sm:$0xff]
        %v215 = vld [vmem:[#allocation5 + $0x28] sm:$0xff]
        %v216 = vld [vmem:[#allocation5 + $0x30] sm:$0xff]
        %v217 = vld [vmem:[#allocation5 + $0x38] sm:$0xff]
        %v218 = vld [vmem:[#allocation5 + $0x40] sm:$0xff]
        %v219 = vld [vmem:[#allocation5 + $0x48] sm:$0xff]
        %v220 = vld [vmem:[#allocation5 + $0x50] sm:$0xff]
        %v221 = vld [vmem:[#allocation5 + $0x58] sm:$0xff]
        %v222 = vld [vmem:[#allocation5 + $0x60] sm:$0xff]
        %v223 = vld [vmem:[#allocation5 + $0x68] sm:$0xff]
        %v224 = vld [vmem:[#allocation5 + $0x70] sm:$0xff]
        %v225 = vld [vmem:[#allocation5 + $0x78] sm:$0xff]
        %v226 = vld [vmem:[#allocation5 + $0x80] sm:$0xff]
        %v227 = vld [vmem:[#allocation5 + $0x88] sm:$0xff]
        %v228 = vld [vmem:[#allocation5 + $0x90] sm:$0xff]
        %v229 = vld [vmem:[#allocation5 + $0x98] sm:$0xff]
        %v230 = vld [vmem:[#allocation5 + $0xa0] sm:$0xff]
        %v231 = vld [vmem:[#allocation5 + $0xa8] sm:$0xff]
        %v232 = vld [vmem:[#allocation5 + $0xb0] sm:$0xff]
        %v233 = vld [vmem:[#allocation5 + $0xb8] sm:$0xff]
        %v234 = vld [vmem:[#allocation5 + $0xc0] sm:$0xff]
        %v235 = vld [vmem:[#allocation5 + $0xc8] sm:$0xff]
        %v236 = vld [vmem:[#allocation5 + $0xd0] sm:$0xff]
        %v237 = vld [vmem:[#allocation5 + $0xd8] sm:$0xff]
        %v238 = vld [vmem:[#allocation5 + $0xe0] sm:$0xff]
        %v239 = vld [vmem:[#allocation5 + $0xe8] sm:$0xff]
        %v240 = vld [vmem:[#allocation5 + $0xf0] sm:$0xff]
        %v241 = vld [vmem:[#allocation5 + $0xf8] sm:$0xff]
        %v242 = vld [vmem:[#allocation5 + $0x100] sm:$0xff]
        %v243 = vld [vmem:[#allocation5 + $0x108] sm:$0xff]
        %v244 = vld [vmem:[#allocation5 + $0x110] sm:$0xff]
        %v245 = vld [vmem:[#allocation5 + $0x118] sm:$0xff]
        %v246 = vld [vmem:[#allocation5 + $0x120] sm:$0xff]
        %v247 = vld [vmem:[#allocation5 + $0x128] sm:$0xff]
        %v248 = vld [vmem:[#allocation5 + $0x130] sm:$0xff]
        %v249 = vld [vmem:[#allocation5 + $0x138] sm:$0xff]
        %v250 = vld [vmem:[#allocation5 + $0x140] sm:$0xff]
        %v251 = vld [vmem:[#allocation5 + $0x148] sm:$0xff]
        %v252 = vld [vmem:[#allocation5 + $0x150] sm:$0xff]
        %v253 = vld [vmem:[#allocation5 + $0x158] sm:$0xff]
        %v254 = vld [vmem:[#allocation5 + $0x160] sm:$0xff]
        %v255 = vld [vmem:[#allocation5 + $0x168] sm:$0xff]
        %v256 = vld [vmem:[#allocation5 + $0x170] sm:$0xff]
        %v257 = vld [vmem:[#allocation5 + $0x178] sm:$0xff]
        %v258 = vld [vmem:[#allocation5 + $0x180] sm:$0xff]
        %v259 = vld [vmem:[#allocation5 + $0x188] sm:$0xff]
        %v260 = vld [vmem:[#allocation5 + $0x190] sm:$0xff]
        %v261 = vld [vmem:[#allocation5 + $0x198] sm:$0xff]
        %v262 = vld [vmem:[#allocation5 + $0x1a0] sm:$0xff]
        %v263 = vld [vmem:[#allocation5 + $0x1a8] sm:$0xff]
        %v264 = vld [vmem:[#allocation5 + $0x1b0] sm:$0xff]
        %v265 = vld [vmem:[#allocation5 + $0x1b8] sm:$0xff]
        %v266 = vld [vmem:[#allocation5 + $0x1c0] sm:$0xff]
        %v267 = vld [vmem:[#allocation5 + $0x1c8] sm:$0xff]
        %v268 = vld [vmem:[#allocation5 + $0x1d0] sm:$0xff]
        %v269 = vld [vmem:[#allocation5 + $0x1d8] sm:$0xff]
        %v270 = vld [vmem:[#allocation5 + $0x1e0] sm:$0xff]
        %v271 = vld [vmem:[#allocation5 + $0x1e8] sm:$0xff]
        %v272 = vld [vmem:[#allocation5 + $0x1f0] sm:$0xff]
        %v273 = vld [vmem:[#allocation5 + $0x1f8] sm:$0xff]
        %v274 = vld [vmem:[#allocation5 + $0x200] sm:$0xff]
        %v275 = vld [vmem:[#allocation5 + $0x208] sm:$0xff]
        %v276 = vld [vmem:[#allocation5 + $0x210] sm:$0xff]
        %v277 = vld [vmem:[#allocation5 + $0x218] sm:$0xff]
        %v278 = vld [vmem:[#allocation5 + $0x220] sm:$0xff]
        %v279 = vld [vmem:[#allocation5 + $0x228] sm:$0xff]
        %v280 = vld [vmem:[#allocation5 + $0x230] sm:$0xff]
        %v281 = vld [vmem:[#allocation5 + $0x238] sm:$0xff]
        %v282 = vld [vmem:[#allocation5 + $0x240] sm:$0xff]
        %v283 = vld [vmem:[#allocation5 + $0x248] sm:$0xff]
        %v284 = vld [vmem:[#allocation5 + $0x250] sm:$0xff]
        %v285 = vld [vmem:[#allocation5 + $0x258] sm:$0xff]
        %v286 = vld [vmem:[#allocation5 + $0x260] sm:$0xff]
        %v287 = vld [vmem:[#allocation5 + $0x268] sm:$0xff]
        %v288 = vld [vmem:[#allocation5 + $0x270] sm:$0xff]
        %v289 = vld [vmem:[#allocation5 + $0x278] sm:$0xff]
        %v290 = vld [vmem:[#allocation5 + $0x280] sm:$0xff]
        %v291 = vld [vmem:[#allocation5 + $0x288] sm:$0xff]
        %v292 = vld [vmem:[#allocation5 + $0x290] sm:$0xff]
        %v293 = vld [vmem:[#allocation5 + $0x298] sm:$0xff]
        %v294 = vld [vmem:[#allocation5 + $0x2a0] sm:$0xff]
        %v295 = vld [vmem:[#allocation5 + $0x2a8] sm:$0xff]
        %v296 = vld [vmem:[#allocation5 + $0x2b0] sm:$0xff]
        %v297 = vld [vmem:[#allocation5 + $0x2b8] sm:$0xff]
        %v298 = vld [vmem:[#allocation5 + $0x2c0] sm:$0xff]
        %v299 = vld [vmem:[#allocation5 + $0x2c8] sm:$0xff]
        %v300 = vld [vmem:[#allocation5 + $0x2d0] sm:$0xff]
        %v301 = vld [vmem:[#allocation5 + $0x2d8] sm:$0xff]
        %v302 = vld [vmem:[#allocation5 + $0x2e0] sm:$0xff]
        %v303 = vld [vmem:[#allocation5 + $0x2e8] sm:$0xff]
        %v304 = vld [vmem:[#allocation5 + $0x2f0] sm:$0xff]
        %v305 = vld [vmem:[#allocation5 + $0x2f8] sm:$0xff]
        %v306 = vld [vmem:[%s2] sm:$0x3]
        %v308 = vlaneseq
        %v309 = vshrl.u32 %v308, 7
        %v310 = vsub.s32 0, %v309
        %v311 = vrot.slane %v306, %v310
        %v312 = vlaneseq
        %v313 = vshrl.u32 %v312, 7
        %v314 = vsub.s32 1, %v313
        %v315 = vrot.slane %v306, %v314
        %v324 = vunpack.c.l.b16 %v204
        %v325 = vunpack.c.h.b16 %v204
        %v326 = vunpack.c.l.b16 %v205
        %v327 = vunpack.c.h.b16 %v205
        %v328 = vunpack.c.l.b16 %v206
        %v329 = vunpack.c.h.b16 %v206
        %v330 = vunpack.c.l.b16 %v207
        %v331 = vunpack.c.h.b16 %v207
        %v332 = vunpack.c.l.b16 %v208
        %v333 = vunpack.c.h.b16 %v208
        %v334 = vunpack.c.l.b16 %v209
        %v335 = vunpack.c.h.b16 %v209
        %v336 = vpack.c.b16 %v330, %v324
        %v337 = vpack.c.b16 %v331, %v325
        %v338 = vpack.c.b16 %v332, %v326
        %v339 = vpack.c.b16 %v333, %v327
        %v340 = vpack.c.b16 %v334, %v328
        %v341 = vpack.c.b16 %v335, %v329
        %v444 = vunpack.c.l.b16 %v210
        %v445 = vunpack.c.h.b16 %v210
        %v446 = vunpack.c.l.b16 %v211
        %v447 = vunpack.c.h.b16 %v211
        %v448 = vunpack.c.l.b16 %v212
        %v449 = vunpack.c.h.b16 %v212
        %v450 = vunpack.c.l.b16 %v213
        %v451 = vunpack.c.h.b16 %v213
        %v452 = vunpack.c.l.b16 %v214
        %v453 = vunpack.c.h.b16 %v214
        %v454 = vunpack.c.l.b16 %v215
        %v455 = vunpack.c.h.b16 %v215
        %v456 = vunpack.c.l.b16 %v216
        %v457 = vunpack.c.h.b16 %v216
        %v458 = vunpack.c.l.b16 %v217
        %v459 = vunpack.c.h.b16 %v217
        %v460 = vunpack.c.l.b16 %v218
        %v461 = vunpack.c.h.b16 %v218
        %v462 = vunpack.c.l.b16 %v219
        %v463 = vunpack.c.h.b16 %v219
        %v464 = vunpack.c.l.b16 %v220
        %v465 = vunpack.c.h.b16 %v220
        %v466 = vunpack.c.l.b16 %v221
        %v467 = vunpack.c.h.b16 %v221
        %v468 = vunpack.c.l.b16 %v222
        %v469 = vunpack.c.h.b16 %v222
        %v470 = vunpack.c.l.b16 %v223
        %v471 = vunpack.c.h.b16 %v223
        %v472 = vunpack.c.l.b16 %v224
        %v473 = vunpack.c.h.b16 %v224
        %v474 = vunpack.c.l.b16 %v225
        %v475 = vunpack.c.h.b16 %v225
        %v476 = vunpack.c.l.b16 %v226
        %v477 = vunpack.c.h.b16 %v226
        %v478 = vunpack.c.l.b16 %v227
        %v479 = vunpack.c.h.b16 %v227
        %v480 = vunpack.c.l.b16 %v228
        %v481 = vunpack.c.h.b16 %v228
        %v482 = vunpack.c.l.b16 %v229
        %v483 = vunpack.c.h.b16 %v229
        %v484 = vunpack.c.l.b16 %v230
        %v485 = vunpack.c.h.b16 %v230
        %v486 = vunpack.c.l.b16 %v231
        %v487 = vunpack.c.h.b16 %v231
        %v488 = vunpack.c.l.b16 %v232
        %v489 = vunpack.c.h.b16 %v232
        %v490 = vunpack.c.l.b16 %v233
        %v491 = vunpack.c.h.b16 %v233
        %v492 = vunpack.c.l.b16 %v234
        %v493 = vunpack.c.h.b16 %v234
        %v494 = vunpack.c.l.b16 %v235
        %v495 = vunpack.c.h.b16 %v235
        %v496 = vunpack.c.l.b16 %v236
        %v497 = vunpack.c.h.b16 %v236
        %v498 = vunpack.c.l.b16 %v237
        %v499 = vunpack.c.h.b16 %v237
        %v500 = vunpack.c.l.b16 %v238
        %v501 = vunpack.c.h.b16 %v238
        %v502 = vunpack.c.l.b16 %v239
        %v503 = vunpack.c.h.b16 %v239
        %v504 = vunpack.c.l.b16 %v240
        %v505 = vunpack.c.h.b16 %v240
        %v506 = vunpack.c.l.b16 %v241
        %v507 = vunpack.c.h.b16 %v241
        %v508 = vunpack.c.l.b16 %v242
        %v509 = vunpack.c.h.b16 %v242
        %v510 = vunpack.c.l.b16 %v243
        %v511 = vunpack.c.h.b16 %v243
        %v512 = vunpack.c.l.b16 %v244
        %v513 = vunpack.c.h.b16 %v244
        %v514 = vunpack.c.l.b16 %v245
        %v515 = vunpack.c.h.b16 %v245
        %v516 = vunpack.c.l.b16 %v246
        %v517 = vunpack.c.h.b16 %v246
        %v518 = vunpack.c.l.b16 %v247
        %v519 = vunpack.c.h.b16 %v247
        %v520 = vunpack.c.l.b16 %v248
        %v521 = vunpack.c.h.b16 %v248
        %v522 = vunpack.c.l.b16 %v249
        %v523 = vunpack.c.h.b16 %v249
        %v524 = vunpack.c.l.b16 %v250
        %v525 = vunpack.c.h.b16 %v250
        %v526 = vunpack.c.l.b16 %v251
        %v527 = vunpack.c.h.b16 %v251
        %v528 = vunpack.c.l.b16 %v252
        %v529 = vunpack.c.h.b16 %v252
        %v530 = vunpack.c.l.b16 %v253
        %v531 = vunpack.c.h.b16 %v253
        %v532 = vunpack.c.l.b16 %v254
        %v533 = vunpack.c.h.b16 %v254
        %v534 = vunpack.c.l.b16 %v255
        %v535 = vunpack.c.h.b16 %v255
        %v536 = vunpack.c.l.b16 %v256
        %v537 = vunpack.c.h.b16 %v256
        %v538 = vunpack.c.l.b16 %v257
        %v539 = vunpack.c.h.b16 %v257
        %v540 = vunpack.c.l.b16 %v258
        %v541 = vunpack.c.h.b16 %v258
        %v542 = vunpack.c.l.b16 %v259
        %v543 = vunpack.c.h.b16 %v259
        %v544 = vunpack.c.l.b16 %v260
        %v545 = vunpack.c.h.b16 %v260
        %v546 = vunpack.c.l.b16 %v261
        %v547 = vunpack.c.h.b16 %v261
        %v548 = vunpack.c.l.b16 %v262
        %v549 = vunpack.c.h.b16 %v262
        %v550 = vunpack.c.l.b16 %v263
        %v551 = vunpack.c.h.b16 %v263
        %v552 = vunpack.c.l.b16 %v264
        %v553 = vunpack.c.h.b16 %v264
        %v554 = vunpack.c.l.b16 %v265
        %v555 = vunpack.c.h.b16 %v265
        %v556 = vunpack.c.l.b16 %v266
        %v557 = vunpack.c.h.b16 %v266
        %v558 = vunpack.c.l.b16 %v267
        %v559 = vunpack.c.h.b16 %v267
        %v560 = vunpack.c.l.b16 %v268
        %v561 = vunpack.c.h.b16 %v268
        %v562 = vunpack.c.l.b16 %v269
        %v563 = vunpack.c.h.b16 %v269
        %v564 = vunpack.c.l.b16 %v270
        %v565 = vunpack.c.h.b16 %v270
        %v566 = vunpack.c.l.b16 %v271
        %v567 = vunpack.c.h.b16 %v271
        %v568 = vunpack.c.l.b16 %v272
        %v569 = vunpack.c.h.b16 %v272
        %v570 = vunpack.c.l.b16 %v273
        %v571 = vunpack.c.h.b16 %v273
        %v572 = vunpack.c.l.b16 %v274
        %v573 = vunpack.c.h.b16 %v274
        %v574 = vunpack.c.l.b16 %v275
        %v575 = vunpack.c.h.b16 %v275
        %v576 = vunpack.c.l.b16 %v276
        %v577 = vunpack.c.h.b16 %v276
        %v578 = vunpack.c.l.b16 %v277
        %v579 = vunpack.c.h.b16 %v277
        %v580 = vunpack.c.l.b16 %v278
        %v581 = vunpack.c.h.b16 %v278
        %v582 = vunpack.c.l.b16 %v279
        %v583 = vunpack.c.h.b16 %v279
        %v584 = vunpack.c.l.b16 %v280
        %v585 = vunpack.c.h.b16 %v280
        %v586 = vunpack.c.l.b16 %v281
        %v587 = vunpack.c.h.b16 %v281
        %v588 = vunpack.c.l.b16 %v282
        %v589 = vunpack.c.h.b16 %v282
        %v590 = vunpack.c.l.b16 %v283
        %v591 = vunpack.c.h.b16 %v283
        %v592 = vunpack.c.l.b16 %v284
        %v593 = vunpack.c.h.b16 %v284
        %v594 = vunpack.c.l.b16 %v285
        %v595 = vunpack.c.h.b16 %v285
        %v596 = vunpack.c.l.b16 %v286
        %v597 = vunpack.c.h.b16 %v286
        %v598 = vunpack.c.l.b16 %v287
        %v599 = vunpack.c.h.b16 %v287
        %v600 = vunpack.c.l.b16 %v288
        %v601 = vunpack.c.h.b16 %v288
        %v602 = vunpack.c.l.b16 %v289
        %v603 = vunpack.c.h.b16 %v289
        %v604 = vunpack.c.l.b16 %v290
        %v605 = vunpack.c.h.b16 %v290
        %v606 = vunpack.c.l.b16 %v291
        %v607 = vunpack.c.h.b16 %v291
        %v608 = vunpack.c.l.b16 %v292
        %v609 = vunpack.c.h.b16 %v292
        %v610 = vunpack.c.l.b16 %v293
        %v611 = vunpack.c.h.b16 %v293
        %v612 = vunpack.c.l.b16 %v294
        %v613 = vunpack.c.h.b16 %v294
        %v614 = vunpack.c.l.b16 %v295
        %v615 = vunpack.c.h.b16 %v295
        %v616 = vunpack.c.l.b16 %v296
        %v617 = vunpack.c.h.b16 %v296
        %v618 = vunpack.c.l.b16 %v297
        %v619 = vunpack.c.h.b16 %v297
        %v620 = vunpack.c.l.b16 %v298
        %v621 = vunpack.c.h.b16 %v298
        %v622 = vunpack.c.l.b16 %v299
        %v623 = vunpack.c.h.b16 %v299
        %v624 = vunpack.c.l.b16 %v300
        %v625 = vunpack.c.h.b16 %v300
        %v626 = vunpack.c.l.b16 %v301
        %v627 = vunpack.c.h.b16 %v301
        %v628 = vunpack.c.l.b16 %v302
        %v629 = vunpack.c.h.b16 %v302
        %v630 = vunpack.c.l.b16 %v303
        %v631 = vunpack.c.h.b16 %v303
        %v632 = vunpack.c.l.b16 %v304
        %v633 = vunpack.c.h.b16 %v304
        %v634 = vunpack.c.l.b16 %v305
        %v635 = vunpack.c.h.b16 %v305
        %v636 = vpack.c.b16 %v446, %v444
        %v637 = vpack.c.b16 %v447, %v445
        %v638 = vpack.c.b16 %v450, %v448
        %v639 = vpack.c.b16 %v451, %v449
        %v640 = vpack.c.b16 %v454, %v452
        %v641 = vpack.c.b16 %v455, %v453
        %v642 = vpack.c.b16 %v458, %v456
        %v643 = vpack.c.b16 %v459, %v457
        %v644 = vpack.c.b16 %v462, %v460
        %v645 = vpack.c.b16 %v463, %v461
        %v646 = vpack.c.b16 %v466, %v464
        %v647 = vpack.c.b16 %v467, %v465
        %v648 = vpack.c.b16 %v470, %v468
        %v649 = vpack.c.b16 %v471, %v469
        %v650 = vpack.c.b16 %v474, %v472
        %v651 = vpack.c.b16 %v475, %v473
        %v652 = vpack.c.b16 %v478, %v476
        %v653 = vpack.c.b16 %v479, %v477
        %v654 = vpack.c.b16 %v482, %v480
        %v655 = vpack.c.b16 %v483, %v481
        %v656 = vpack.c.b16 %v486, %v484
        %v657 = vpack.c.b16 %v487, %v485
        %v658 = vpack.c.b16 %v490, %v488
        %v659 = vpack.c.b16 %v491, %v489
        %v660 = vpack.c.b16 %v494, %v492
        %v661 = vpack.c.b16 %v495, %v493
        %v662 = vpack.c.b16 %v498, %v496
        %v663 = vpack.c.b16 %v499, %v497
        %v664 = vpack.c.b16 %v502, %v500
        %v665 = vpack.c.b16 %v503, %v501
        %v666 = vpack.c.b16 %v506, %v504
        %v667 = vpack.c.b16 %v507, %v505
        %v668 = vpack.c.b16 %v510, %v508
        %v669 = vpack.c.b16 %v511, %v509
        %v670 = vpack.c.b16 %v514, %v512
        %v671 = vpack.c.b16 %v515, %v513
        %v672 = vpack.c.b16 %v518, %v516
        %v673 = vpack.c.b16 %v519, %v517
        %v674 = vpack.c.b16 %v522, %v520
        %v675 = vpack.c.b16 %v523, %v521
        %v676 = vpack.c.b16 %v526, %v524
        %v677 = vpack.c.b16 %v527, %v525
        %v678 = vpack.c.b16 %v530, %v528
        %v679 = vpack.c.b16 %v531, %v529
        %v680 = vpack.c.b16 %v534, %v532
        %v681 = vpack.c.b16 %v535, %v533
        %v682 = vpack.c.b16 %v538, %v536
        %v683 = vpack.c.b16 %v539, %v537
        %v684 = vpack.c.b16 %v542, %v540
        %v685 = vpack.c.b16 %v543, %v541
        %v686 = vpack.c.b16 %v546, %v544
        %v687 = vpack.c.b16 %v547, %v545
        %v688 = vpack.c.b16 %v550, %v548
        %v689 = vpack.c.b16 %v551, %v549
        %v690 = vpack.c.b16 %v554, %v552
        %v691 = vpack.c.b16 %v555, %v553
        %v692 = vpack.c.b16 %v558, %v556
        %v693 = vpack.c.b16 %v559, %v557
        %v694 = vpack.c.b16 %v562, %v560
        %v695 = vpack.c.b16 %v563, %v561
        %v696 = vpack.c.b16 %v566, %v564
        %v697 = vpack.c.b16 %v567, %v565
        %v698 = vpack.c.b16 %v570, %v568
        %v699 = vpack.c.b16 %v571, %v569
        %v700 = vpack.c.b16 %v574, %v572
        %v701 = vpack.c.b16 %v575, %v573
        %v702 = vpack.c.b16 %v578, %v576
        %v703 = vpack.c.b16 %v579, %v577
        %v704 = vpack.c.b16 %v582, %v580
        %v705 = vpack.c.b16 %v583, %v581
        %v706 = vpack.c.b16 %v586, %v584
        %v707 = vpack.c.b16 %v587, %v585
        %v708 = vpack.c.b16 %v590, %v588
        %v709 = vpack.c.b16 %v591, %v589
        %v710 = vpack.c.b16 %v594, %v592
        %v711 = vpack.c.b16 %v595, %v593
        %v712 = vpack.c.b16 %v598, %v596
        %v713 = vpack.c.b16 %v599, %v597
        %v714 = vpack.c.b16 %v602, %v600
        %v715 = vpack.c.b16 %v603, %v601
        %v716 = vpack.c.b16 %v606, %v604
        %v717 = vpack.c.b16 %v607, %v605
        %v718 = vpack.c.b16 %v610, %v608
        %v719 = vpack.c.b16 %v611, %v609
        %v720 = vpack.c.b16 %v614, %v612
        %v721 = vpack.c.b16 %v615, %v613
        %v722 = vpack.c.b16 %v618, %v616
        %v723 = vpack.c.b16 %v619, %v617
        %v724 = vpack.c.b16 %v622, %v620
        %v725 = vpack.c.b16 %v623, %v621
        %v726 = vpack.c.b16 %v626, %v624
        %v727 = vpack.c.b16 %v627, %v625
        %v728 = vpack.c.b16 %v630, %v628
        %v729 = vpack.c.b16 %v631, %v629
        %v730 = vpack.c.b16 %v634, %v632
        %v731 = vpack.c.b16 %v635, %v633
        %828 = vmatprep.subr.bf16.mxu0 %v651
        %829 = vmatpush1.bf16.msra.mxu0 %v650
        %830 = vmatprep.subr.bf16.mxu0 %v649
        %831 = vmatpush1.bf16.msra.mxu0 %v648
        %832 = vmatprep.subr.bf16.mxu0 %v647
        %833 = vmatpush1.bf16.msra.mxu0 %v646
        %834 = vmatprep.subr.bf16.mxu0 %v645
        %835 = vmatpush1.bf16.msra.mxu0 %v644
        %836 = vmatprep.subr.bf16.mxu0 %v643
        %837 = vmatpush1.bf16.msra.mxu0 %v642
        %838 = vmatprep.subr.bf16.mxu0 %v641
        %839 = vmatpush1.bf16.msra.mxu0 %v640
        %840 = vmatprep.subr.bf16.mxu0 %v639
        %841 = vmatpush1.bf16.msra.mxu0 %v638
        %842 = vmatprep.subr.bf16.mxu0 %v637
        %843 = vmatpush1.bf16.msra.mxu0 %v636
        %844 = vmatprep.subr.bf16.mxu0 %v667
        %845 = vmatpush2.bf16.msra.mxu0 %v666
        %846 = vmatprep.subr.bf16.mxu0 %v665
        %847 = vmatpush2.bf16.msra.mxu0 %v664
        %848 = vmatprep.subr.bf16.mxu0 %v663
        %849 = vmatpush2.bf16.msra.mxu0 %v662
        %850 = vmatprep.subr.bf16.mxu0 %v661
        %851 = vmatpush2.bf16.msra.mxu0 %v660
        %852 = vmatprep.subr.bf16.mxu0 %v659
        %853 = vmatpush2.bf16.msra.mxu0 %v658
        %854 = vmatprep.subr.bf16.mxu0 %v657
        %855 = vmatpush2.bf16.msra.mxu0 %v656
        %856 = vmatprep.subr.bf16.mxu0 %v655
        %857 = vmatpush2.bf16.msra.mxu0 %v654
        %858 = vmatprep.subr.bf16.mxu0 %v653
        %859 = vmatpush2.bf16.msra.mxu0 %v652
        %860 = vmatprep.mubr.bf16.mxu0 %v337
        %861 = vmatmul.mubr.bf16.gmra.mxu0 %v336
        %v862 = vpop.f32.mrf.mxu0
        %v863 = vadd.f32 %v311, %v862
        %v864 = vpop.f32.mrf.mxu0
        %v865 = vadd.f32 %v315, %v864
        %v866 = vpop.f32.mrf.mxu0
        %v867 = vadd.f32 %v311, %v866
        %v868 = vpop.f32.mrf.mxu0
        %v869 = vadd.f32 %v315, %v868
        %870 = vdwg.mxu0
        %871 = vmatprep.subr.bf16.mxu0 %v683
        %872 = vmatpush1.bf16.msra.mxu0 %v682
        %873 = vmatprep.subr.bf16.mxu0 %v681
        %874 = vmatpush1.bf16.msra.mxu0 %v680
        %875 = vmatprep.subr.bf16.mxu0 %v679
        %876 = vmatpush1.bf16.msra.mxu0 %v678
        %877 = vmatprep.subr.bf16.mxu0 %v677
        %878 = vmatpush1.bf16.msra.mxu0 %v676
        %879 = vmatprep.subr.bf16.mxu0 %v675
        %880 = vmatpush1.bf16.msra.mxu0 %v674
        %881 = vmatprep.subr.bf16.mxu0 %v673
        %882 = vmatpush1.bf16.msra.mxu0 %v672
        %883 = vmatprep.subr.bf16.mxu0 %v671
        %884 = vmatpush1.bf16.msra.mxu0 %v670
        %885 = vmatprep.subr.bf16.mxu0 %v669
        %886 = vmatpush1.bf16.msra.mxu0 %v668
        %887 = vmatprep.subr.bf16.mxu0 %v699
        %888 = vmatpush2.bf16.msra.mxu0 %v698
        %889 = vmatprep.subr.bf16.mxu0 %v697
        %890 = vmatpush2.bf16.msra.mxu0 %v696
        %891 = vmatprep.subr.bf16.mxu0 %v695
        %892 = vmatpush2.bf16.msra.mxu0 %v694
        %893 = vmatprep.subr.bf16.mxu0 %v693
        %894 = vmatpush2.bf16.msra.mxu0 %v692
        %895 = vmatprep.subr.bf16.mxu0 %v691
        %896 = vmatpush2.bf16.msra.mxu0 %v690
        %897 = vmatprep.subr.bf16.mxu0 %v689
        %898 = vmatpush2.bf16.msra.mxu0 %v688
        %899 = vmatprep.subr.bf16.mxu0 %v687
        %900 = vmatpush2.bf16.msra.mxu0 %v686
        %901 = vmatprep.subr.bf16.mxu0 %v685
        %902 = vmatpush2.bf16.msra.mxu0 %v684
        %903 = vmatprep.mubr.bf16.mxu0 %v339
        %904 = vmatmul.mubr.bf16.gmra.mxu0 %v338
        %v905 = vpop.f32.mrf.mxu0
        %v906 = vadd.f32 %v863, %v905
        %v907 = vpop.f32.mrf.mxu0
        %v908 = vadd.f32 %v865, %v907
        %v909 = vpop.f32.mrf.mxu0
        %v910 = vadd.f32 %v867, %v909
        %v911 = vpop.f32.mrf.mxu0
        %v912 = vadd.f32 %v869, %v911
        %913 = vdwg.mxu0
        %914 = vmatprep.subr.bf16.mxu0 %v715
        %915 = vmatpush1.bf16.msra.mxu0 %v714
        %916 = vmatprep.subr.bf16.mxu0 %v713
        %917 = vmatpush1.bf16.msra.mxu0 %v712
        %918 = vmatprep.subr.bf16.mxu0 %v711
        %919 = vmatpush1.bf16.msra.mxu0 %v710
        %920 = vmatprep.subr.bf16.mxu0 %v709
        %921 = vmatpush1.bf16.msra.mxu0 %v708
        %922 = vmatprep.subr.bf16.mxu0 %v707
        %923 = vmatpush1.bf16.msra.mxu0 %v706
        %924 = vmatprep.subr.bf16.mxu0 %v705
        %925 = vmatpush1.bf16.msra.mxu0 %v704
        %926 = vmatprep.subr.bf16.mxu0 %v703
        %927 = vmatpush1.bf16.msra.mxu0 %v702
        %928 = vmatprep.subr.bf16.mxu0 %v701
        %929 = vmatpush1.bf16.msra.mxu0 %v700
        %930 = vmatprep.subr.bf16.mxu0 %v731
        %931 = vmatpush2.bf16.msra.mxu0 %v730
        %932 = vmatprep.subr.bf16.mxu0 %v729
        %933 = vmatpush2.bf16.msra.mxu0 %v728
        %934 = vmatprep.subr.bf16.mxu0 %v727
        %935 = vmatpush2.bf16.msra.mxu0 %v726
        %936 = vmatprep.subr.bf16.mxu0 %v725
        %937 = vmatpush2.bf16.msra.mxu0 %v724
        %938 = vmatprep.subr.bf16.mxu0 %v723
        %939 = vmatpush2.bf16.msra.mxu0 %v722
        %940 = vmatprep.subr.bf16.mxu0 %v721
        %941 = vmatpush2.bf16.msra.mxu0 %v720
        %942 = vmatprep.subr.bf16.mxu0 %v719
        %943 = vmatpush2.bf16.msra.mxu0 %v718
        %944 = vmatprep.subr.bf16.mxu0 %v717
        %945 = vmatpush2.bf16.msra.mxu0 %v716
        %946 = vmatprep.mubr.bf16.mxu0 %v341
        %947 = vmatmul.mubr.bf16.gmra.mxu0 %v340
        %v948 = vpop.f32.mrf.mxu0
        %v949 = vadd.f32 %v906, %v948
        %v950 = vpop.f32.mrf.mxu0
        %v951 = vadd.f32 %v908, %v950
        %v952 = vpop.f32.mrf.mxu0
        %v953 = vadd.f32 %v910, %v952
        %v954 = vpop.f32.mrf.mxu0
        %v955 = vadd.f32 %v912, %v954
        %956 = vdwg.mxu0
        %957 = vst [vmem:[%s203] sm:$0xff] %v949
        %958 = vst [vmem:[%s203 + $0x8] sm:$0xff] %v951
        %959 = vst [vmem:[%s203 + $0x10] sm:$0xff] %v953
        %960 = vst [vmem:[%s203 + $0x18] sm:$0xff] %v955
        %s961 = sand.u32 %s97, 1
        %s962 = scalar_lea.sflag [#allocation4], %s961
        %s963 = sand.u32 %s97, 1
        %s964 = smul.addr %s963, 32
        %s965 = scalar_lea.vmem [#allocation7], %s964
        // Predicated region
        $region41: #{tpu_custom_call.1} parent=31 // pred_check
          %p966 = pneg %p107
        $region42: #{tpu_custom_call.1} parent=31 // pred_check_branch
          %968 = sbr.rel (%p966) target = $region44
        $region43: #{tpu_custom_call.1} parent=31 // pred_region
          %s970 = ssub.s32 512, 512
          %971 = vsyncadd %s962, %s970
          %s972 = smul.addr %s21, 4
          %s973 = smul.addr %s972, 128
          %s974 = scalar_lea.hbm %s3, %s973
          %s975 = sshll.u32 %s965, 4
          %s976 = int_to_ptr.vmem [resolvable:$true] %s975
          %981 = dma.vmem_to_hbm [thread:$0]  %s976, 512, %s974, %s962, 256, 256, 16
        $region44: #{tpu_custom_call.1} parent=31 // pred_fallthru
          _
      $region32: #{tpu_custom_call.1} parent=5 // pred_fallthru
        _
      %p982 = scmp.le.s32.totalorder 2, %s16
      // Predicated region
      $region45: #{tpu_custom_call.1} parent=5 // pred_check
        %p983 = pneg %p982
      $region46: #{tpu_custom_call.1} parent=5 // pred_check_branch
        %985 = sbr.rel (%p983) target = $region48
      $region47: #{tpu_custom_call.1} parent=5 // pred_region
        %s986 = ssub.s32 %s16, 2
        // Predicated region
        $region49: #{tpu_custom_call.1} parent=47 // pred_check
          %p987 = pneg %p113
        $region50: #{tpu_custom_call.1} parent=47 // pred_check_branch
          %989 = sbr.rel (%p987) target = $region52
        $region51: #{tpu_custom_call.1} parent=47 // pred_region
          %s990 = sand.u32 %s98, 1
          %s991 = scalar_lea.sflag [#allocation4], %s990
          %s992 = sand.u32 %s98, 1
          %s993 = smul.addr %s992, 32
          %s994 = scalar_lea.vmem [#allocation7], %s993
          %995 = dma.done %s991, 512
        $region52: #{tpu_custom_call.1} parent=47 // pred_fallthru
          _
      $region48: #{tpu_custom_call.1} parent=5 // pred_fallthru
        _
    $region6: #{tpu_custom_call.1} parent=1 // loop_footer
      %s20 = sadd.s32 1, %s16
    $region7: #{tpu_custom_call.1} parent=1 // loop_footer_branch
      %15 = sbr.rel target = $region3
    $region8: #{tpu_custom_call.1} parent=1 // loop_exit
      _
    %996 = vsyncpa [#allocation3], 1
    %s997 = scalar_lea.sflag [#allocation3], 1
    %998 = vsyncpa %s997, 1
    %999 = vsyncpa [#allocation6], 1
    %1000 = vsyncpa [#allocation4], 1
    %s1001 = scalar_lea.sflag [#allocation4], 1
    %1002 = vsyncpa %s1001, 1

</llo_original>
